<compile_context>
chip_gen: v7x
topology: tpu7x:2x2x1
jax: 0.10.0
libtpu: 0.0.40
codegen_flags: <defaults>
</compile_context>

<pallas_src>
import functools

import jax
import jax.numpy as jnp
from jax.experimental import pallas as pl
from jax.experimental.pallas import tpu as pltpu


def _cond_layer_norm_kernel(x_ref, wb_ref, o_ref, *, epsilon):
    # x_ref : (TS, H) tile of one batch row.
    # wb_ref: (2, H) per-batch rows -- row 0 = scale, row 1 = shift
    #         (precomputed by the fused conditional matmul in the wrapper).
    x = x_ref[...].astype(jnp.float32)                        # (TS, H)

    # LayerNorm statistics over the hidden dimension (unbiased=False).
    # Two-pass form kept: numerics identical to the PyTorch reference, and the
    # kernel is HBM-bound so the extra sweep is free slack (per review).
    mean = jnp.mean(x, axis=-1, keepdims=True)                # (TS, 1)
    xc = x - mean                                             # reuse centered value
    var = jnp.mean(xc * xc, axis=-1, keepdims=True)           # (TS, 1)
    normed = xc * jax.lax.rsqrt(var + epsilon)                # (TS, H) f32

    w = wb_ref[0:1, :]                                        # (1, H)
    b = wb_ref[1:2, :]                                        # (1, H)
    # Epilogue FMA runs in wb's dtype: f32 for f32 inputs (reference numerics),
    # bf16 for bf16 inputs on v6e/v7x (halves epilogue vreg pressure).
    o_ref[...] = (normed.astype(w.dtype) * w + b).astype(o_ref.dtype)


def _cdiv(a, b):
    return -(-a // b)


def _plan_tiling(B, S, H, itemsize, seq_tile=None,
                 target_block_bytes=1 << 20,      # ~1 MiB x/out blocks
                 min_grid_steps=8):               # keep both v7x TCs busy
    """Pick the sequence tile and a right-sized VMEM limit."""
    if seq_tile is None:
        # ~1 MiB blocks already saturate HBM bandwidth (~85% roofline measured);
        # bigger tiles only shrink pipeline steps and inflate f32 temporaries.
        ts = max(8, (target_block_bytes // max(1, H * itemsize)) // 8 * 8)
        # Shrink until the 2-D parallel grid has enough steps to shard across
        # both TensorCores on v7x (no-op on single-TC v5e/v6e).
        while ts > 8 and B * _cdiv(S, ts) < min_grid_steps:
            ts = max(8, (ts // 2) // 8 * 8)
        if ts >= S:
            ts = S                                # full extent -- always legal
    else:
        ts = seq_tile

    # Honest VMEM accounting: double-buffered x/out/wb blocks plus ~4
    # tile-sized f32 temporaries (x upcast, xc, normed, epilogue) in the body.
    io_bytes = 2 * (2 * ts * H * itemsize) + 2 * (2 * H * 4)
    temp_bytes = 4 * ts * H * 4
    need = io_bytes + temp_bytes
    vmem_limit = max(16 * 1024 * 1024, min(32 * 1024 * 1024, 2 * need))
    # Generation-aware cap: v7x only has 64 MiB VMEM per TensorCore.
    try:
        cap = pltpu.get_tpu_info().vmem_capacity_bytes
        vmem_limit = min(vmem_limit, cap // 2)
    except Exception:
        pass
    return ts, vmem_limit


def cond_layer_norm(x, cond, w_weight, w_bias, b_weight, b_bias,
                    epsilon=1e-5, seq_tile=None):
    """x: [B, S, H], cond: [B, C], w_weight/b_weight: [H, C], w_bias/b_bias: [H]."""
    B, S, H = x.shape

    # ---- Conditional affine hoisted out of the kernel: one fused
    # [B, C] @ [C, 2H] matmul in XLA (fills the MXU and keeps the (C, H)
    # weights out of the kernel's VMEM entirely). ----
    fused_w = jnp.concatenate([jnp.transpose(w_weight),
                               jnp.transpose(b_weight)], axis=1)       # (C, 2H)
    fused_b = jnp.concatenate([w_bias, b_bias], axis=0)                # (2H,)
    wb = jnp.dot(cond, fused_w, preferred_element_type=jnp.float32)    # (B, 2H)
    wb = wb + fused_b.astype(jnp.float32)

    # bf16 epilogue on bf16 inputs (v6e/v7x have bf16 VALU); f32 otherwise.
    # TODO(synk): force the f32 epilogue on v5e (no bf16 VALU) via a chip query.
    epi_dtype = jnp.bfloat16 if x.dtype == jnp.bfloat16 else jnp.float32
    # Single fused per-batch scale/shift input: (B, 2, H), one BlockSpec / DMA.
    wb_rows = jnp.stack([wb[:, :H], wb[:, H:]], axis=1).astype(epi_dtype)

    # ---- Sequence tiling: ~1 MiB lane-dense blocks, enough grid steps. ----
    # TODO(synk): if production H is not a multiple of 128, pad H to the next
    # multiple of 128 (with masked statistics) to keep stores lane-dense.
    seq_tile, vmem_limit = _plan_tiling(
        B, S, H, jnp.dtype(x.dtype).itemsize, seq_tile=seq_tile)
    num_s_tiles = _cdiv(S, seq_tile)   # per-row math => partial tail tile is safe

    kernel = functools.partial(_cond_layer_norm_kernel, epsilon=epsilon)

    return pl.pallas_call(
        kernel,
        out_shape=jax.ShapeDtypeStruct((B, S, H), x.dtype),
        grid_spec=pltpu.PrefetchScalarGridSpec(
            num_scalar_prefetch=0,
            grid=(B, num_s_tiles),
            in_specs=[
                # x tile: kernel sees (TS, H)
                pl.BlockSpec((pl.Squeezed(), seq_tile, H),
                             lambda b, s: (b, s, 0)),
                # fused per-batch scale/shift: kernel sees (2, H)
                pl.BlockSpec((pl.Squeezed(), 2, H), lambda b, s: (b, 0, 0)),
            ],
            out_specs=pl.BlockSpec((pl.Squeezed(), seq_tile, H),
                                   lambda b, s: (b, s, 0)),
        ),
        compiler_params=pltpu.CompilerParams(
            dimension_semantics=("parallel", "parallel"),
            vmem_limit_bytes=vmem_limit,
        ),
    )(x, wb_rows)


def cond_layer_norm_ref(x, cond, w_weight, w_bias, b_weight, b_bias,
                        epsilon=1e-5):
    """Pure-JAX reference mirroring the PyTorch forward."""
    mean = jnp.mean(x, axis=-1, keepdims=True)
    var = jnp.mean((x - mean) ** 2, axis=-1, keepdims=True)
    normed = (x - mean) / jnp.sqrt(var + epsilon)
    w = cond @ w_weight.T + w_bias            # (B, H)
    b = cond @ b_weight.T + b_bias            # (B, H)
    return normed * w[:, None, :] + b[:, None, :]


if __name__ == "__main__":
    # Small shapes consistent with the module. H=128 keeps stores lane-dense.
    B, S, H, C = 2, 8, 128, 16
    key = jax.random.PRNGKey(0)
    kx, kc, kw1, kb1, kw2, kb2, kx2 = jax.random.split(key, 7)

    x = jax.random.normal(kx, (B, S, H), dtype=jnp.float32)
    cond = jax.random.normal(kc, (B, C), dtype=jnp.float32)

    # nn.Linear(cond_size, input_size) shaped parameters.  The module's
    # reset_parameters would set (0, 1, 0, 0); use small random values to
    # exercise the full computation path.
    w_weight = 0.1 * jax.random.normal(kw1, (H, C), dtype=jnp.float32)
    w_bias = jnp.ones((H,), dtype=jnp.float32) + 0.05 * jax.random.normal(
        kb1, (H,), dtype=jnp.float32)
    b_weight = 0.1 * jax.random.normal(kw2, (H, C), dtype=jnp.float32)
    b_bias = 0.05 * jax.random.normal(kb2, (H,), dtype=jnp.float32)

    out = cond_layer_norm(x, cond, w_weight, w_bias, b_weight, b_bias)
    out = jax.block_until_ready(out)
    ref = cond_layer_norm_ref(x, cond, w_weight, w_bias, b_weight, b_bias)
    assert out.shape == (B, S, H)
    assert jnp.allclose(out, ref, atol=1e-5, rtol=1e-5), "mismatch vs reference"

    # Tail-tile coverage (per review): S not divisible by the sequence tile.
    S2 = 20
    x2 = jax.random.normal(kx2, (B, S2, H), dtype=jnp.float32)
    out2 = cond_layer_norm(x2, cond, w_weight, w_bias, b_weight, b_bias,
                           seq_tile=8)
    out2 = jax.block_until_ready(out2)
    ref2 = cond_layer_norm_ref(x2, cond, w_weight, w_bias, b_weight, b_bias)
    assert out2.shape == (B, S2, H)
    assert jnp.allclose(out2, ref2, atol=1e-5, rtol=1e-5), "tail-tile mismatch"

    print("KERNEL_OK")
</pallas_src>

<mosaic_0001>
module attributes {stable_mosaic.version = 11 : i64} {
  func.func @_cond_layer_norm_kernel(%arg0: i32, %arg1: i32, %arg2: memref<1x8x128xf32, #tpu.memory_space<vmem>>, %arg3: memref<1x2x128xf32, #tpu.memory_space<vmem>>, %arg4: memref<1x8x128xf32, #tpu.memory_space<vmem>>) attributes {dimension_semantics = [#tpu.dimension_semantics<parallel>, #tpu.dimension_semantics<parallel>], iteration_bounds = array<i64: 2, 1>, scalar_prefetch = 0 : i64, scratch_operands = 0 : i64, tpu.core_type = #tpu.core_type<tc>, window_params = [{transform_indices = @transform_0, window_bounds = array<i64: 1, 8, 128>}, {transform_indices = @transform_1, window_bounds = array<i64: 1, 2, 128>}, {transform_indices = @transform_2, window_bounds = array<i64: 1, 8, 128>}]} {
    %c0 = arith.constant 0 : index
    %c0_0 = arith.constant 0 : index
    %c0_1 = arith.constant 0 : index
    %0 = vector.load %arg2[%c0, %c0_0, %c0_1] : memref<1x8x128xf32, #tpu.memory_space<vmem>>, vector<1x8x128xf32>
    %1 = vector.shape_cast %0 : vector<1x8x128xf32> to vector<8x128xf32>
    %cst = arith.constant dense<0.000000e+00> : vector<8xf32>
    %2 = vector.multi_reduction <add>, %1, %cst [1] : vector<8x128xf32> to vector<8xf32>
    %3 = vector.shape_cast %2 : vector<8xf32> to vector<8x1xf32>
    %cst_2 = arith.constant 1.280000e+02 : f32
    %4 = vector.broadcast %cst_2 : f32 to vector<8x1xf32>
    %5 = arith.divf %3, %4 : vector<8x1xf32>
    %6 = vector.broadcast %5 : vector<8x1xf32> to vector<8x128xf32>
    %7 = arith.subf %1, %6 : vector<8x128xf32>
    %8 = arith.mulf %7, %7 : vector<8x128xf32>
    %cst_3 = arith.constant dense<0.000000e+00> : vector<8xf32>
    %9 = vector.multi_reduction <add>, %8, %cst_3 [1] : vector<8x128xf32> to vector<8xf32>
    %10 = vector.shape_cast %9 : vector<8xf32> to vector<8x1xf32>
    %cst_4 = arith.constant 1.280000e+02 : f32
    %11 = vector.broadcast %cst_4 : f32 to vector<8x1xf32>
    %12 = arith.divf %10, %11 : vector<8x1xf32>
    %cst_5 = arith.constant 9.99999974E-6 : f32
    %13 = vector.broadcast %cst_5 : f32 to vector<8x1xf32>
    %14 = arith.addf %12, %13 : vector<8x1xf32>
    %15 = math.rsqrt %14 : vector<8x1xf32>
    %16 = vector.broadcast %15 : vector<8x1xf32> to vector<8x128xf32>
    %17 = arith.mulf %7, %16 : vector<8x128xf32>
    %c0_6 = arith.constant 0 : index
    %c0_7 = arith.constant 0 : index
    %c0_8 = arith.constant 0 : index
    %18 = vector.load %arg3[%c0_6, %c0_7, %c0_8] : memref<1x2x128xf32, #tpu.memory_space<vmem>>, vector<1x1x128xf32>
    %19 = vector.shape_cast %18 : vector<1x1x128xf32> to vector<1x128xf32>
    %c0_9 = arith.constant 0 : index
    %c1 = arith.constant 1 : index
    %c0_10 = arith.constant 0 : index
    %20 = vector.load %arg3[%c0_9, %c1, %c0_10] : memref<1x2x128xf32, #tpu.memory_space<vmem>>, vector<1x1x128xf32>
    %21 = vector.shape_cast %20 : vector<1x1x128xf32> to vector<1x128xf32>
    %22 = vector.broadcast %19 : vector<1x128xf32> to vector<8x128xf32>
    %23 = arith.mulf %17, %22 : vector<8x128xf32>
    %24 = vector.broadcast %21 : vector<1x128xf32> to vector<8x128xf32>
    %25 = arith.addf %23, %24 : vector<8x128xf32>
    %c0_11 = arith.constant 0 : index
    %c0_12 = arith.constant 0 : index
    %c0_13 = arith.constant 0 : index
    %26 = vector.load %arg4[%c0_11, %c0_12, %c0_13] : memref<1x8x128xf32, #tpu.memory_space<vmem>>, vector<1x8x128xf32>
    %27 = vector.shape_cast %26 : vector<1x8x128xf32> to vector<8x128xf32>
    %28 = vector.shape_cast %25 : vector<8x128xf32> to vector<1x8x128xf32>
    tpu.vector_store %arg4[%c0_11, %c0_12, %c0_13], %28 {strides = array<i32>} : memref<1x8x128xf32, #tpu.memory_space<vmem>>, vector<1x8x128xf32>,
    return
  }
  func.func @transform_0(%arg0: i32, %arg1: i32) -> (i32, i32, i32) {
    %c0_i32 = arith.constant 0 : i32
    %c0_i32_0 = arith.constant 0 : i32
    return %arg0, %arg1, %c0_i32 : i32, i32, i32
  }
  func.func @transform_1(%arg0: i32, %arg1: i32) -> (i32, i32, i32) {
    %c0_i32 = arith.constant 0 : i32
    %c0_i32_0 = arith.constant 0 : i32
    %c0_i32_1 = arith.constant 0 : i32
    return %arg0, %c0_i32, %c0_i32_0 : i32, i32, i32
  }
  func.func @transform_2(%arg0: i32, %arg1: i32) -> (i32, i32, i32) {
    %c0_i32 = arith.constant 0 : i32
    %c0_i32_0 = arith.constant 0 : i32
    return %arg0, %arg1, %c0_i32 : i32, i32, i32
  }
}

</mosaic_0001>

<llo_original>
// kernel: tpu_custom_call.1
$region0: #{tpu_custom_call.1}
  #allocation0 [shape = 'u32[]', space=smem, size = 0x4, offset = 0x4, fixed_abs, tag = 'smem constant byte address 0x4 - core index']
  #allocation1 [shape = 'u32[144,128]{1,0:T(1,128)}', space=vmem, size = 0x12000, scoped, tag = 'internal scratch']
  %s0 = inlined_call_operand.hbm [shape: f32[2,8,128], index: 0, kind: input, shape index: {}]
  %s1 = inlined_call_operand.hbm [shape: f32[2,2,128], index: 1, kind: input, shape index: {}]
  %s2 = inlined_call_operand.hbm [shape: f32[2,8,128], index: 2, kind: output, shape index: {}]
  %s3 = sld [smem:[#allocation0]]
  $region49: #{tpu_custom_call.1} parent=0
    _
  %s5 = ssub.s32 1, %s3
  %s6 = scalar_select 0, %s5, %s3
  $region1: #{tpu_custom_call.1} parent=0
    #allocation2 [shape = 'u8[8192]{0}', space=vmem, size = 0x2000, scoped, tag = 'input window, operand 0']
    #allocation3 [shape = 's32[2]{0}', space=sflag, size = 0x8, scoped, tag = 'scoped memory for tpu_custom_call.1']
    #allocation4 [shape = 's32[2]{0}', space=sflag, size = 0x8, scoped, tag = 'scoped memory for tpu_custom_call.1']
    #allocation5 [shape = 'u8[2048]{0}', space=vmem, size = 0x800, scoped, tag = 'input window, operand 1']
    #allocation6 [shape = 's32[2]{0}', space=sflag, size = 0x8, scoped, tag = 'scoped memory for tpu_custom_call.1']
    #allocation7 [shape = 'u8[8192]{0}', space=vmem, size = 0x2000, scoped, tag = 'output window, operand 0']
    %7 = vsyncpa [#allocation3], 0
    %s8 = scalar_lea.sflag [#allocation3], 1
    %9 = vsyncpa %s8, 0
    %10 = vsyncpa [#allocation6], 0
    %s11 = scalar_lea.sflag [#allocation6], 1
    %12 = vsyncpa %s11, 0
    %13 = vsyncpa [#allocation4], 0
    %s14 = scalar_lea.sflag [#allocation4], 1
    %15 = vsyncpa %s14, 0
    loop: start=0, step=1, limit=4
    $region2: #{tpu_custom_call.1} parent=1 // loop_pre_header
      _
    $region3: #{tpu_custom_call.1} parent=1 // loop_header
      %s17 = sphi 0, %s21
      %p18 = scmp.ge.s32.totalorder %s17, 4
      %s24 = sphi 0, %s36
      %s25 = sphi 0, %s32
      %s26 = sphi 0, %s24
      %s27 = sphi 0, %s25
      %s28 = sphi 0, %s26
      %s29 = sphi 0, %s27
      %s41 = sphi 0, %s43
      %s44 = sphi 0, %s41
      %s45 = sphi 0, %s44
      %s61 = sphi 0, %s45
      %s67 = sphi 0, %s69
      %s70 = sphi 0, %s67
      %s71 = sphi 0, %s70
      %s87 = sphi 0, %s71
      %s95 = sphi 0, %s97
      %s98 = sphi 0, %s95
      %s99 = sphi 0, %s98
      %s115 = sphi 0, %s99
    $region4: #{tpu_custom_call.1} parent=1 // loop_header_branch
      %20 = sbr.rel (%p18) target = $region8
    $region5: #{tpu_custom_call.1} parent=1 // loop_body
      %s22 = ssub.s32 %s17, 1
      %s23 = ssub.s32 %s17, 2
      %s30 = sadd.s32 1, %s25
      %p31 = scmp.ge.s32.totalorder %s30, 1
      %s32 = scalar_select %p31, 0, %s30
      %s33 = sadd.s32 1, %s24
      %s34 = scalar_select %p31, %s33, %s24
      %p35 = scmp.ge.s32.totalorder %s34, 2
      %s36 = scalar_select %p35, 0, %s34
      %s37 = ssub.s32 %s24, %s36
      %s38 = ssub.s32 %s25, %s32
      %s39 = sor.u32 %s37, %s38
      %p40 = scmp.eq.s32.totalorder %s39, 0
      %s42 = sadd.s32 %s41, 1
      %s43 = scalar_select %p40, %s41, %s42
      %p46 = pneg %p40
      %p47 = scmp.eq.s32.totalorder %s17, 1
      %p48 = por %p46, %p47
      %p49 = scmp.ne.s32.totalorder %s41, %s44
      %p50 = scmp.eq.s32.totalorder %s17, 0
      %p51 = por %p49, %p50
      %p52 = scmp.ne.s32.totalorder %s41, %s44
      %p53 = scmp.eq.s32.totalorder %s22, 1
      %p54 = por %p52, %p53
      %p55 = scmp.ne.s32.totalorder %s44, %s45
      %p56 = scmp.eq.s32.totalorder %s22, 0
      %p57 = por %p55, %p56
      %p58 = scmp.ne.s32.totalorder %s44, %s45
      %p59 = scmp.eq.s32.totalorder %s23, 1
      %p60 = por %p58, %p59
      %p62 = scmp.ne.s32.totalorder %s45, %s61
      %p63 = scmp.eq.s32.totalorder %s23, 0
      %p64 = por %p62, %p63
      %s65 = ssub.s32 %s24, %s36
      %p66 = scmp.eq.s32.totalorder %s65, 0
      %s68 = sadd.s32 %s67, 1
      %s69 = scalar_select %p66, %s67, %s68
      %p72 = pneg %p66
      %p73 = scmp.eq.s32.totalorder %s17, 1
      %p74 = por %p72, %p73
      %p75 = scmp.ne.s32.totalorder %s67, %s70
      %p76 = scmp.eq.s32.totalorder %s17, 0
      %p77 = por %p75, %p76
      %p78 = scmp.ne.s32.totalorder %s67, %s70
      %p79 = scmp.eq.s32.totalorder %s22, 1
      %p80 = por %p78, %p79
      %p81 = scmp.ne.s32.totalorder %s70, %s71
      %p82 = scmp.eq.s32.totalorder %s22, 0
      %p83 = por %p81, %p82
      %p84 = scmp.ne.s32.totalorder %s70, %s71
      %p85 = scmp.eq.s32.totalorder %s23, 1
      %p86 = por %p84, %p85
      %p88 = scmp.ne.s32.totalorder %s71, %s87
      %p89 = scmp.eq.s32.totalorder %s23, 0
      %p90 = por %p88, %p89
      %s91 = ssub.s32 %s24, %s36
      %s92 = ssub.s32 %s25, %s32
      %s93 = sor.u32 %s91, %s92
      %p94 = scmp.eq.s32.totalorder %s93, 0
      %s96 = sadd.s32 %s95, 1
      %s97 = scalar_select %p94, %s95, %s96
      %p100 = pneg %p94
      %p101 = scmp.eq.s32.totalorder %s17, 1
      %p102 = por %p100, %p101
      %p103 = scmp.ne.s32.totalorder %s95, %s98
      %p104 = scmp.eq.s32.totalorder %s17, 0
      %p105 = por %p103, %p104
      %p106 = scmp.ne.s32.totalorder %s95, %s98
      %p107 = scmp.eq.s32.totalorder %s22, 1
      %p108 = por %p106, %p107
      %p109 = scmp.ne.s32.totalorder %s98, %s99
      %p110 = scmp.eq.s32.totalorder %s22, 0
      %p111 = por %p109, %p110
      %p112 = scmp.ne.s32.totalorder %s98, %s99
      %p113 = scmp.eq.s32.totalorder %s23, 1
      %p114 = por %p112, %p113
      %p116 = scmp.ne.s32.totalorder %s99, %s115
      %p117 = scmp.eq.s32.totalorder %s23, 0
      %p118 = por %p116, %p117
      %p119 = scmp.le.s32.totalorder 1, %s17
      %p120 = scmp.lt.s32.totalorder %s17, 3
      %p121 = pnand %p119, %p120
      %p122 = pneg %p121
      // Predicated region
      $region9: #{tpu_custom_call.1} parent=5 // pred_check
        _
      $region10: #{tpu_custom_call.1} parent=5 // pred_check_branch
        %124 = sbr.rel (%p121) target = $region12
      $region11: #{tpu_custom_call.1} parent=5 // pred_region
        %s125 = ssub.s32 %s17, 1
      $region12: #{tpu_custom_call.1} parent=5 // pred_fallthru
        _
      %p126 = scmp.lt.s32.totalorder %s17, 2
      // Predicated region
      $region13: #{tpu_custom_call.1} parent=5 // pred_check
        %p127 = pneg %p126
      $region14: #{tpu_custom_call.1} parent=5 // pred_check_branch
        %129 = sbr.rel (%p127) target = $region16
      $region15: #{tpu_custom_call.1} parent=5 // pred_region
        // Predicated region
        $region17: #{tpu_custom_call.1} parent=15 // pred_check
          %p130 = pneg %p51
        $region18: #{tpu_custom_call.1} parent=15 // pred_check_branch
          %132 = sbr.rel (%p130) target = $region20
        $region19: #{tpu_custom_call.1} parent=15 // pred_region
          %s133 = sand.u32 %s41, 1
          %s134 = scalar_lea.sflag [#allocation3], %s133
          %s135 = sand.u32 %s41, 1
          %s136 = smul.addr %s135, 8
          %s137 = scalar_lea.vmem [#allocation2], %s136
          %s139 = ssub.s32 128, 128
          %140 = vsyncadd %s134, %s139
          %s141 = sadd.s32 %s25, %s24
          %s142 = smul.addr %s141, 128
          %s143 = scalar_lea.hbm %s0, %s142
          %s145 = sshll.u32 %s137, 4
          %s146 = int_to_ptr.vmem [resolvable:$true] %s145
          %148 = dma.hbm_to_vmem [thread:$0]  %s143, 128, %s146, %s134
        $region20: #{tpu_custom_call.1} parent=15 // pred_fallthru
          _
        // Predicated region
        $region21: #{tpu_custom_call.1} parent=15 // pred_check
          %p149 = pneg %p77
        $region22: #{tpu_custom_call.1} parent=15 // pred_check_branch
          %151 = sbr.rel (%p149) target = $region24
        $region23: #{tpu_custom_call.1} parent=15 // pred_region
          %s152 = sand.u32 %s67, 1
          %s153 = scalar_lea.sflag [#allocation6], %s152
          %s154 = sand.u32 %s67, 1
          %s155 = smul.addr %s154, 2
          %s156 = scalar_lea.vmem [#allocation5], %s155
          %s158 = ssub.s32 32, 32
          %159 = vsyncadd %s153, %s158
          %s160 = smul.addr %s24, 32
          %s161 = scalar_lea.hbm %s1, %s160
          %s163 = sshll.u32 %s156, 4
          %s164 = int_to_ptr.vmem [resolvable:$true] %s163
          %166 = dma.hbm_to_vmem [thread:$0]  %s161, 32, %s164, %s153
        $region24: #{tpu_custom_call.1} parent=15 // pred_fallthru
          _
      $region16: #{tpu_custom_call.1} parent=5 // pred_fallthru
        _
      %p167 = scmp.le.s32.totalorder 1, %s17
      %p168 = scmp.lt.s32.totalorder %s17, 3
      %p169 = pnand %p167, %p168
      %p170 = pneg %p169
      // Predicated region
      $region25: #{tpu_custom_call.1} parent=5 // pred_check
        _
      $region26: #{tpu_custom_call.1} parent=5 // pred_check_branch
        %172 = sbr.rel (%p169) target = $region28
      $region27: #{tpu_custom_call.1} parent=5 // pred_region
        %s173 = ssub.s32 %s17, 1
        %s174 = sand.u32 %s44, 1
        %s175 = scalar_lea.sflag [#allocation3], %s174
        %s176 = sand.u32 %s44, 1
        %s177 = smul.addr %s176, 8
        %s178 = scalar_lea.vmem [#allocation2], %s177
        // Predicated region
        $region29: #{tpu_custom_call.1} parent=27 // pred_check
          %p179 = pneg %p57
        $region30: #{tpu_custom_call.1} parent=27 // pred_check_branch
          %181 = sbr.rel (%p179) target = $region32
        $region31: #{tpu_custom_call.1} parent=27 // pred_region
          %182 = dma.done %s175, 128
        $region32: #{tpu_custom_call.1} parent=27 // pred_fallthru
          _
        %s183 = sand.u32 %s70, 1
        %s184 = scalar_lea.sflag [#allocation6], %s183
        %s185 = sand.u32 %s70, 1
        %s186 = smul.addr %s185, 2
        %s187 = scalar_lea.vmem [#allocation5], %s186
        // Predicated region
        $region33: #{tpu_custom_call.1} parent=27 // pred_check
          %p188 = pneg %p83
        $region34: #{tpu_custom_call.1} parent=27 // pred_check_branch
          %190 = sbr.rel (%p188) target = $region36
        $region35: #{tpu_custom_call.1} parent=27 // pred_region
          %191 = dma.done %s184, 32
        $region36: #{tpu_custom_call.1} parent=27 // pred_fallthru
          _
        %s192 = sand.u32 %s44, 1
        %s193 = scalar_lea.sflag [#allocation3], %s192
        %s194 = sand.u32 %s44, 1
        %s195 = smul.addr %s194, 8
        %s196 = scalar_lea.vmem [#allocation2], %s195
        %p197 = pneg %p57
        %p198 = pneg %p54
        %s199 = sand.u32 %s70, 1
        %s200 = scalar_lea.sflag [#allocation6], %s199
        %s201 = sand.u32 %s70, 1
        %s202 = smul.addr %s201, 2
        %s203 = scalar_lea.vmem [#allocation5], %s202
        %p204 = pneg %p83
        %p205 = pneg %p80
        %p206 = pneg %p111
        %p207 = pneg %p108
        %s208 = sand.u32 %s98, 1
        %s209 = scalar_lea.sflag [#allocation4], %s208
        %s210 = sand.u32 %s98, 1
        %s211 = smul.addr %s210, 8
        %s212 = scalar_lea.vmem [#allocation7], %s211
        %v213 = vld [vmem:[%s178] sm:$0xff]
        %214 = vadd.xlane.f32.xlu0 %v213
        %v215 = vpop.xlane.xlu0 %214
        %v216 = vrcp.pop 128.0
        %v217 = vmul.f32 %v215, %v216
        %v218 = vsub.f32 %v213, %v217
        %v219 = vmul.f32 %v218, %v218
        %220 = vadd.xlane.f32.xlu0 %v219
        %v221 = vpop.xlane.xlu0 %220
        %v222 = vmul.f32 %v221, %v216
        %v223 = vadd.f32 %v222, 1e-05
        %v224 = vrsqrt.pop %v223
        %v225 = vmul.f32 %v218, %v224
        %v226 = vld [vmem:[%s187] sm:$0x1]
        %v227 = vld [vmem:[%s187 + $0x1] sm:$0x1]
        %v228 = vlaneseq
        %v229 = vshrl.u32 %v228, 7
        %v230 = vsub.s32 0, %v229
        %v231 = vrot.slane %v226, %v230
        %v232 = vmul.f32 %v225, %v231
        %v233 = vlaneseq
        %v234 = vshrl.u32 %v233, 7
        %v235 = vsub.s32 0, %v234
        %v236 = vrot.slane %v227, %v235
        %v237 = vadd.f32 %v232, %v236
        %238 = vst [vmem:[%s212] sm:$0xff] %v237
        %s239 = sand.u32 %s98, 1
        %s240 = scalar_lea.sflag [#allocation4], %s239
        %s241 = sand.u32 %s98, 1
        %s242 = smul.addr %s241, 8
        %s243 = scalar_lea.vmem [#allocation7], %s242
        // Predicated region
        $region37: #{tpu_custom_call.1} parent=27 // pred_check
          %p244 = pneg %p108
        $region38: #{tpu_custom_call.1} parent=27 // pred_check_branch
          %246 = sbr.rel (%p244) target = $region40
        $region39: #{tpu_custom_call.1} parent=27 // pred_region
          %s248 = ssub.s32 128, 128
          %249 = vsyncadd %s240, %s248
          %s250 = sadd.s32 %s27, %s26
          %s251 = smul.addr %s250, 128
          %s252 = scalar_lea.hbm %s2, %s251
          %s254 = sshll.u32 %s243, 4
          %s255 = int_to_ptr.vmem [resolvable:$true] %s254
          %257 = dma.vmem_to_hbm [thread:$0]  %s255, 128, %s252, %s240
        $region40: #{tpu_custom_call.1} parent=27 // pred_fallthru
          _
      $region28: #{tpu_custom_call.1} parent=5 // pred_fallthru
        _
      %p258 = scmp.le.s32.totalorder 2, %s17
      // Predicated region
      $region41: #{tpu_custom_call.1} parent=5 // pred_check
        %p259 = pneg %p258
      $region42: #{tpu_custom_call.1} parent=5 // pred_check_branch
        %261 = sbr.rel (%p259) target = $region44
      $region43: #{tpu_custom_call.1} parent=5 // pred_region
        %s262 = ssub.s32 %s17, 2
        // Predicated region
        $region45: #{tpu_custom_call.1} parent=43 // pred_check
          %p263 = pneg %p114
        $region46: #{tpu_custom_call.1} parent=43 // pred_check_branch
          %265 = sbr.rel (%p263) target = $region48
        $region47: #{tpu_custom_call.1} parent=43 // pred_region
          %s266 = sand.u32 %s99, 1
          %s267 = scalar_lea.sflag [#allocation4], %s266
          %s268 = sand.u32 %s99, 1
          %s269 = smul.addr %s268, 8
          %s270 = scalar_lea.vmem [#allocation7], %s269
          %271 = dma.done %s267, 128
        $region48: #{tpu_custom_call.1} parent=43 // pred_fallthru
          _
      $region44: #{tpu_custom_call.1} parent=5 // pred_fallthru
        _
    $region6: #{tpu_custom_call.1} parent=1 // loop_footer
      %s21 = sadd.s32 1, %s17
    $region7: #{tpu_custom_call.1} parent=1 // loop_footer_branch
      %16 = sbr.rel target = $region3
    $region8: #{tpu_custom_call.1} parent=1 // loop_exit
      _
    %272 = vsyncpa [#allocation3], 1
    %s273 = scalar_lea.sflag [#allocation3], 1
    %274 = vsyncpa %s273, 1
    %275 = vsyncpa [#allocation6], 1
    %s276 = scalar_lea.sflag [#allocation6], 1
    %277 = vsyncpa %s276, 1
    %278 = vsyncpa [#allocation4], 1
    %s279 = scalar_lea.sflag [#allocation4], 1
    %280 = vsyncpa %s279, 1

</llo_original>
